<compile_context>
chip_gen: v6e
topology: v6e:2x2x1
jax: 0.10.0
libtpu: 0.0.40
codegen_flags: <defaults>
</compile_context>

<pallas_src>
import jax
import jax.numpy as jnp
from jax.experimental import pallas as pl
from jax.experimental.pallas import tpu as pltpu

_NUM_CORE_SPLITS = 2            # leading "parallel" grid axis -> v7x dual-TC sharding
_PRED_BUFFER_BUDGET = 8 << 20   # bytes budget for the 4 double-buffered pred blocks
_SMALL_INPUT_ELEMS = 1 << 20    # below this, let XLA fuse the loss (launch-bound)


def _round_up(x, m):
    return (x + m - 1) // m * m


def _loss_kernel(pred1_ref, pred2_ref, mask1_ref, mask2_ref, out_ref):
    """Accumulates sum((pred1*(1-mask1) - pred2*(1-mask2))**2) over row tiles.

    pred refs : [TM//8, 8, Dp]   (native dtype; cast to f32 on load)
    mask refs : [TM//8, 8, 1]
    out_ref   : [8, Dp] f32      per-core accumulator, resident across the row axis
    """
    i = pl.program_id(1)

    @pl.when(i == 0)
    def _init():
        out_ref[...] = jnp.zeros_like(out_ref)

    p1 = pred1_ref[...].astype(jnp.float32)
    p2 = pred2_ref[...].astype(jnp.float32)
    w1 = 1.0 - mask1_ref[...].astype(jnp.float32)
    w2 = 1.0 - mask2_ref[...].astype(jnp.float32)
    diff = p1 * w1 - p2 * w2                       # VPU; weights lane-broadcast
    out_ref[...] += jnp.sum(diff * diff, axis=0)   # leading-dim reduce: sequential vreg adds


def multi_decoder_losses(imgs, pred1, pred2, idx1, idx2, mask1, mask2,
                         *, alpha=1.0, beta=1.0, patch_size=(4, 4),
                         grid_size=None, norm_pix_loss=False,
                         use_pallas=None):
    """Pallas port of Multi_decoder_losses.forward.

    imgs/idx1/idx2 and alpha/beta/patch_size/grid_size/norm_pix_loss only feed
    dead code in the original forward, so they do not affect the result.
    """
    del imgs, idx1, idx2, alpha, beta, patch_size, grid_size, norm_pix_loss

    n, l, d = pred1.shape
    nl = n * l

    if use_pallas is None:
        use_pallas = (nl * d) >= _SMALL_INPUT_ELEMS
    if not use_pallas:
        # Tiny case: custom-call launch + DMA setup dominates; let XLA fuse it.
        w1 = 1.0 - mask1.astype(jnp.float32)[..., None]
        w2 = 1.0 - mask2.astype(jnp.float32)[..., None]
        diff = pred1.astype(jnp.float32) * w1 - pred2.astype(jnp.float32) * w2
        return jnp.sum(diff * diff) * (1.0 / float(l))

    pred_itemsize = jnp.dtype(pred1.dtype).itemsize
    mask_itemsize = jnp.dtype(mask1.dtype).itemsize
    d_pad = _round_up(d, 128)

    # Rows per block: keep (2 preds x 2 pipeline buffers) under the VMEM budget.
    tm = _PRED_BUFFER_BUDGET // (4 * d_pad * pred_itemsize)
    tm = max(8, min(1024, (tm // 8) * 8))
    tm = max(8, min(tm, _round_up(nl, 8)))          # don't over-pad tiny inputs
    nl_pad = _round_up(nl, _NUM_CORE_SPLITS * tm)
    tiles_per_core = nl_pad // (_NUM_CORE_SPLITS * tm)
    tm8 = tm // 8

    def _prep_pred(p):
        p = p.reshape(nl, d)
        p = jnp.pad(p, ((0, nl_pad - nl), (0, d_pad - d)))
        return p.reshape(nl_pad // 8, 8, d_pad)

    def _prep_mask(m):
        m = m.reshape(nl, 1)
        m = jnp.pad(m, ((0, nl_pad - nl), (0, 0)))
        return m.reshape(nl_pad // 8, 8, 1)

    p1, p2 = _prep_pred(pred1), _prep_pred(pred2)
    m1, m2 = _prep_mask(mask1), _prep_mask(mask2)

    pred_spec = pl.BlockSpec(
        (tm8, 8, d_pad), lambda c, i: (c * tiles_per_core + i, 0, 0))
    mask_spec = pl.BlockSpec(
        (tm8, 8, 1), lambda c, i: (c * tiles_per_core + i, 0, 0))

    partials = pl.pallas_call(
        _loss_kernel,
        out_shape=jax.ShapeDtypeStruct((_NUM_CORE_SPLITS * 8, d_pad), jnp.float32),
        grid_spec=pltpu.PrefetchScalarGridSpec(
            num_scalar_prefetch=0,
            grid=(_NUM_CORE_SPLITS, tiles_per_core),
            in_specs=[pred_spec, pred_spec, mask_spec, mask_spec],
            out_specs=pl.BlockSpec((8, d_pad), lambda c, i: (c, 0)),
        ),
        compiler_params=pltpu.CompilerParams(
            dimension_semantics=("parallel", "arbitrary"),
            vmem_limit_bytes=32 * 1024 * 1024,
        ),
        cost_estimate=pl.CostEstimate(
            flops=6 * nl_pad * d_pad,
            transcendentals=0,
            bytes_accessed=(2 * nl_pad * d_pad * pred_itemsize
                            + 2 * nl_pad * mask_itemsize
                            + _NUM_CORE_SPLITS * 8 * d_pad * 4),
        ),
    )(p1, p2, m1, m2)

    # Final tiny reduce (2 * 8 * Dp elements) + static 1/L scale in XLA.
    return jnp.sum(partials) * (1.0 / float(l))


# ----------------------------------------------------------------------------
# Pure-JAX literal translation of the PyTorch forward (used only for checking).
# ----------------------------------------------------------------------------
def _patchify(x, patch_size):
    p0, p1 = patch_size
    n, c, hh, ww = x.shape
    h, w = hh // p0, ww // p1
    x = x.reshape(n, c, h, p0, w, p1)
    x = jnp.einsum('nchpwq->nhwpqc', x)
    return x.reshape(n, h * w, p0 * p1 * c)


def _reference(imgs, pred1, pred2, idx1, idx2, mask1, mask2,
               patch_size=(4, 4), norm_pix_loss=False):
    target1 = _patchify(imgs[:, :, idx1, :], patch_size)
    target2 = _patchify(imgs[:, :, idx2, :], patch_size)
    if norm_pix_loss:
        mean1 = target1.mean(axis=-1, keepdims=True)
        var1 = target1.var(axis=-1, ddof=1, keepdims=True)
        target1 = (target1 - mean1) / jnp.sqrt(var1 + 1e-6)
        mean2 = target2.mean(axis=-1, keepdims=True)
        var2 = target2.var(axis=-1, ddof=1, keepdims=True)
        target2 = (target2 - mean2) / jnp.sqrt(var2 + 1e-6)
    # Note: target1/target2 are unused below, exactly as in the PyTorch module.
    del target1, target2
    p1 = pred1 * (1.0 - mask1[:, :, None])
    p2 = pred2 * (1.0 - mask2[:, :, None])
    return ((p1 - p2) ** 2).mean(axis=1).sum()


if __name__ == "__main__":
    key = jax.random.PRNGKey(0)
    n, c, hh, ww = 2, 3, 16, 16
    p = (4, 4)
    idx1 = jnp.arange(0, hh, 2)                   # 8 even rows
    idx2 = jnp.arange(1, hh, 2)                   # 8 odd rows
    l = (idx1.shape[0] // p[0]) * (ww // p[1])    # 2 * 4 = 8 patches
    d = p[0] * p[1] * 3                           # 48

    k1, k2, k3, k4, k5 = jax.random.split(key, 5)
    imgs = jax.random.normal(k1, (n, c, hh, ww), dtype=jnp.float32)
    pred1 = jax.random.normal(k2, (n, l, d), dtype=jnp.float32)
    pred2 = jax.random.normal(k3, (n, l, d), dtype=jnp.float32)
    mask1 = (jax.random.uniform(k4, (n, l)) < 0.75).astype(jnp.float32)
    mask2 = (jax.random.uniform(k5, (n, l)) < 0.75).astype(jnp.float32)

    # Force the Pallas path (auto dispatch would route this tiny demo to XLA).
    loss = multi_decoder_losses(imgs, pred1, pred2, idx1, idx2, mask1, mask2,
                                patch_size=p, use_pallas=True)
    loss = jax.block_until_ready(loss)

    ref = _reference(imgs, pred1, pred2, idx1, idx2, mask1, mask2, patch_size=p)
    assert jnp.allclose(loss, ref, rtol=1e-5, atol=1e-5), (float(loss), float(ref))
    print("KERNEL_OK")
</pallas_src>

<mosaic_0001>
module attributes {stable_mosaic.version = 11 : i64} {
  func.func @_loss_kernel(%arg0: i32, %arg1: i32, %arg2: memref<2x8x128xf32, #tpu.memory_space<vmem>>, %arg3: memref<2x8x128xf32, #tpu.memory_space<vmem>>, %arg4: memref<2x8x1xf32, #tpu.memory_space<vmem>>, %arg5: memref<2x8x1xf32, #tpu.memory_space<vmem>>, %arg6: memref<8x128xf32, #tpu.memory_space<vmem>>) attributes {dimension_semantics = [#tpu.dimension_semantics<parallel>, #tpu.dimension_semantics<arbitrary>], iteration_bounds = array<i64: 2, 1>, scalar_prefetch = 0 : i64, scratch_operands = 0 : i64, tpu.core_type = #tpu.core_type<tc>, window_params = [{transform_indices = @transform_0, window_bounds = array<i64: 2, 8, 128>}, {transform_indices = @transform_1, window_bounds = array<i64: 2, 8, 128>}, {transform_indices = @transform_2, window_bounds = array<i64: 2, 8, 1>}, {transform_indices = @transform_3, window_bounds = array<i64: 2, 8, 1>}, {transform_indices = @transform_4, window_bounds = array<i64: 8, 128>}]} {
    %c0_i32 = arith.constant 0 : i32
    %0 = arith.cmpi eq, %arg1, %c0_i32 : i32
    %1 = arith.extui %0 : i1 to i32
    %c0_i32_0 = arith.constant 0 : i32
    %2 = arith.cmpi ne, %1, %c0_i32_0 : i32
    scf.if %2 {
      %cst_18 = arith.constant 0.000000e+00 : f32
      %21 = vector.broadcast %cst_18 : f32 to vector<8x128xf32>
      %c0_19 = arith.constant 0 : index
      %c0_20 = arith.constant 0 : index
      %22 = vector.load %arg6[%c0_19, %c0_20] : memref<8x128xf32, #tpu.memory_space<vmem>>, vector<8x128xf32>
      tpu.vector_store %arg6[%c0_19, %c0_20], %21 {strides = array<i32>} : memref<8x128xf32, #tpu.memory_space<vmem>>, vector<8x128xf32>,
    } else {
    }
    %c0 = arith.constant 0 : index
    %c0_1 = arith.constant 0 : index
    %c0_2 = arith.constant 0 : index
    %3 = vector.load %arg2[%c0, %c0_1, %c0_2] : memref<2x8x128xf32, #tpu.memory_space<vmem>>, vector<2x8x128xf32>
    %c0_3 = arith.constant 0 : index
    %c0_4 = arith.constant 0 : index
    %c0_5 = arith.constant 0 : index
    %4 = vector.load %arg3[%c0_3, %c0_4, %c0_5] : memref<2x8x128xf32, #tpu.memory_space<vmem>>, vector<2x8x128xf32>
    %c0_6 = arith.constant 0 : index
    %c0_7 = arith.constant 0 : index
    %c0_8 = arith.constant 0 : index
    %5 = vector.load %arg4[%c0_6, %c0_7, %c0_8] : memref<2x8x1xf32, #tpu.memory_space<vmem>>, vector<2x8x1xf32>
    %cst = arith.constant 1.000000e+00 : f32
    %6 = vector.broadcast %cst : f32 to vector<2x8x1xf32>
    %7 = arith.subf %6, %5 : vector<2x8x1xf32>
    %c0_9 = arith.constant 0 : index
    %c0_10 = arith.constant 0 : index
    %c0_11 = arith.constant 0 : index
    %8 = vector.load %arg5[%c0_9, %c0_10, %c0_11] : memref<2x8x1xf32, #tpu.memory_space<vmem>>, vector<2x8x1xf32>
    %cst_12 = arith.constant 1.000000e+00 : f32
    %9 = vector.broadcast %cst_12 : f32 to vector<2x8x1xf32>
    %10 = arith.subf %9, %8 : vector<2x8x1xf32>
    %11 = vector.broadcast %7 : vector<2x8x1xf32> to vector<2x8x128xf32>
    %12 = arith.mulf %3, %11 : vector<2x8x128xf32>
    %13 = vector.broadcast %10 : vector<2x8x1xf32> to vector<2x8x128xf32>
    %14 = arith.mulf %4, %13 : vector<2x8x128xf32>
    %15 = arith.subf %12, %14 : vector<2x8x128xf32>
    %c0_13 = arith.constant 0 : index
    %c0_14 = arith.constant 0 : index
    %16 = vector.load %arg6[%c0_13, %c0_14] : memref<8x128xf32, #tpu.memory_space<vmem>>, vector<8x128xf32>
    %17 = arith.mulf %15, %15 : vector<2x8x128xf32>
    %cst_15 = arith.constant dense<0.000000e+00> : vector<8x128xf32>
    %18 = vector.multi_reduction <add>, %17, %cst_15 [0] : vector<2x8x128xf32> to vector<8x128xf32>
    %19 = arith.addf %16, %18 : vector<8x128xf32>
    %c0_16 = arith.constant 0 : index
    %c0_17 = arith.constant 0 : index
    %20 = vector.load %arg6[%c0_16, %c0_17] : memref<8x128xf32, #tpu.memory_space<vmem>>, vector<8x128xf32>
    tpu.vector_store %arg6[%c0_16, %c0_17], %19 {strides = array<i32>} : memref<8x128xf32, #tpu.memory_space<vmem>>, vector<8x128xf32>,
    return
  }
  func.func @transform_0(%arg0: i32, %arg1: i32) -> (i32, i32, i32) {
    %c1_i32 = arith.constant 1 : i32
    %0 = arith.muli %arg0, %c1_i32 : i32
    %1 = arith.addi %0, %arg1 : i32
    %c0_i32 = arith.constant 0 : i32
    %c0_i32_0 = arith.constant 0 : i32
    %c0_i32_1 = arith.constant 0 : i32
    return %1, %c0_i32, %c0_i32_0 : i32, i32, i32
  }
  func.func @transform_1(%arg0: i32, %arg1: i32) -> (i32, i32, i32) {
    %c1_i32 = arith.constant 1 : i32
    %0 = arith.muli %arg0, %c1_i32 : i32
    %1 = arith.addi %0, %arg1 : i32
    %c0_i32 = arith.constant 0 : i32
    %c0_i32_0 = arith.constant 0 : i32
    %c0_i32_1 = arith.constant 0 : i32
    return %1, %c0_i32, %c0_i32_0 : i32, i32, i32
  }
  func.func @transform_2(%arg0: i32, %arg1: i32) -> (i32, i32, i32) {
    %c1_i32 = arith.constant 1 : i32
    %0 = arith.muli %arg0, %c1_i32 : i32
    %1 = arith.addi %0, %arg1 : i32
    %c0_i32 = arith.constant 0 : i32
    %c0_i32_0 = arith.constant 0 : i32
    %c0_i32_1 = arith.constant 0 : i32
    return %1, %c0_i32, %c0_i32_0 : i32, i32, i32
  }
  func.func @transform_3(%arg0: i32, %arg1: i32) -> (i32, i32, i32) {
    %c1_i32 = arith.constant 1 : i32
    %0 = arith.muli %arg0, %c1_i32 : i32
    %1 = arith.addi %0, %arg1 : i32
    %c0_i32 = arith.constant 0 : i32
    %c0_i32_0 = arith.constant 0 : i32
    %c0_i32_1 = arith.constant 0 : i32
    return %1, %c0_i32, %c0_i32_0 : i32, i32, i32
  }
  func.func @transform_4(%arg0: i32, %arg1: i32) -> (i32, i32) {
    %c0_i32 = arith.constant 0 : i32
    %c0_i32_0 = arith.constant 0 : i32
    return %arg0, %c0_i32 : i32, i32
  }
}

</mosaic_0001>

<llo_original>
// kernel: tpu_custom_call.1
$region0: #{tpu_custom_call.1}
  #allocation0 [shape = 'u32[]', space=smem, size = 0x4, offset = 0x4, fixed_abs, tag = 'smem constant byte address 0x4 - core index']
  #allocation1 [shape = 'u32[144,128]{1,0:T(1,128)}', space=vmem, size = 0x12000, scoped, tag = 'internal scratch']
  %s0 = inlined_call_operand.vmem [shape: f32[4,8,128], index: 0, kind: input, shape index: {}]
  %s1 = inlined_call_operand.vmem [shape: f32[4,8,128], index: 1, kind: input, shape index: {}]
  %s2 = inlined_call_operand.vmem [shape: f32[4,8,1], index: 2, kind: input, shape index: {}]
  %s3 = inlined_call_operand.vmem [shape: f32[4,8,1], index: 3, kind: input, shape index: {}]
  %s4 = inlined_call_operand.hbm [shape: f32[16,128], index: 4, kind: output, shape index: {}]
  %s5 = sld [smem:[#allocation0]]
  $region53: #{tpu_custom_call.1} parent=0
    _
  %s7 = ssub.s32 1, %s5
  %s8 = scalar_select 0, %s7, %s5
  $region1: #{tpu_custom_call.1} parent=0
    #allocation2 [shape = 'u8[8192]{0}', space=vmem, size = 0x2000, scoped, tag = 'output window, operand 0']
    #allocation3 [shape = 's32[2]{0}', space=sflag, size = 0x8, scoped, tag = 'scoped memory for tpu_custom_call.1']
    %9 = vsyncpa [#allocation3], 0
    %s10 = scalar_lea.sflag [#allocation3], 1
    %11 = vsyncpa %s10, 0
    loop: start=0, step=1, limit=4
    $region2: #{tpu_custom_call.1} parent=1 // loop_pre_header
      _
    $region3: #{tpu_custom_call.1} parent=1 // loop_header
      %s13 = sphi 0, %s17
      %p14 = scmp.ge.s32.totalorder %s13, 4
      %s20 = sphi 0, %s32
      %s21 = sphi 0, %s28
      %s22 = sphi 0, %s20
      %s23 = sphi 0, %s21
      %s24 = sphi 0, %s22
      %s25 = sphi 0, %s23
      %s37 = sphi 0, %s39
      %s40 = sphi 0, %s37
      %s41 = sphi 0, %s40
      %s57 = sphi 0, %s41
      %s65 = sphi 0, %s67
      %s68 = sphi 0, %s65
      %s69 = sphi 0, %s68
      %s85 = sphi 0, %s69
      %s93 = sphi 0, %s95
      %s96 = sphi 0, %s93
      %s97 = sphi 0, %s96
      %s113 = sphi 0, %s97
      %s121 = sphi 0, %s123
      %s124 = sphi 0, %s121
      %s125 = sphi 0, %s124
      %s141 = sphi 0, %s125
      %s147 = sphi 0, %s149
      %s150 = sphi 0, %s147
      %s151 = sphi 0, %s150
      %s167 = sphi 0, %s151
    $region4: #{tpu_custom_call.1} parent=1 // loop_header_branch
      %16 = sbr.rel (%p14) target = $region8
    $region5: #{tpu_custom_call.1} parent=1 // loop_body
      %s18 = ssub.s32 %s13, 1
      %s19 = ssub.s32 %s13, 2
      %s26 = sadd.s32 1, %s21
      %p27 = scmp.ge.s32.totalorder %s26, 1
      %s28 = scalar_select %p27, 0, %s26
      %s29 = sadd.s32 1, %s20
      %s30 = scalar_select %p27, %s29, %s20
      %p31 = scmp.ge.s32.totalorder %s30, 2
      %s32 = scalar_select %p31, 0, %s30
      %s33 = sadd.s32 %s20, %s21
      %s34 = sadd.s32 %s32, %s28
      %s35 = ssub.s32 %s33, %s34
      %p36 = scmp.eq.s32.totalorder %s35, 0
      %s38 = sadd.s32 %s37, 1
      %s39 = scalar_select %p36, %s37, %s38
      %p42 = pneg %p36
      %p43 = scmp.eq.s32.totalorder %s13, 1
      %p44 = por %p42, %p43
      %p45 = scmp.ne.s32.totalorder %s37, %s40
      %p46 = scmp.eq.s32.totalorder %s13, 0
      %p47 = por %p45, %p46
      %p48 = scmp.ne.s32.totalorder %s37, %s40
      %p49 = scmp.eq.s32.totalorder %s18, 1
      %p50 = por %p48, %p49
      %p51 = scmp.ne.s32.totalorder %s40, %s41
      %p52 = scmp.eq.s32.totalorder %s18, 0
      %p53 = por %p51, %p52
      %p54 = scmp.ne.s32.totalorder %s40, %s41
      %p55 = scmp.eq.s32.totalorder %s19, 1
      %p56 = por %p54, %p55
      %p58 = scmp.ne.s32.totalorder %s41, %s57
      %p59 = scmp.eq.s32.totalorder %s19, 0
      %p60 = por %p58, %p59
      %s61 = sadd.s32 %s20, %s21
      %s62 = sadd.s32 %s32, %s28
      %s63 = ssub.s32 %s61, %s62
      %p64 = scmp.eq.s32.totalorder %s63, 0
      %s66 = sadd.s32 %s65, 1
      %s67 = scalar_select %p64, %s65, %s66
      %p70 = pneg %p64
      %p71 = scmp.eq.s32.totalorder %s13, 1
      %p72 = por %p70, %p71
      %p73 = scmp.ne.s32.totalorder %s65, %s68
      %p74 = scmp.eq.s32.totalorder %s13, 0
      %p75 = por %p73, %p74
      %p76 = scmp.ne.s32.totalorder %s65, %s68
      %p77 = scmp.eq.s32.totalorder %s18, 1
      %p78 = por %p76, %p77
      %p79 = scmp.ne.s32.totalorder %s68, %s69
      %p80 = scmp.eq.s32.totalorder %s18, 0
      %p81 = por %p79, %p80
      %p82 = scmp.ne.s32.totalorder %s68, %s69
      %p83 = scmp.eq.s32.totalorder %s19, 1
      %p84 = por %p82, %p83
      %p86 = scmp.ne.s32.totalorder %s69, %s85
      %p87 = scmp.eq.s32.totalorder %s19, 0
      %p88 = por %p86, %p87
      %s89 = sadd.s32 %s20, %s21
      %s90 = sadd.s32 %s32, %s28
      %s91 = ssub.s32 %s89, %s90
      %p92 = scmp.eq.s32.totalorder %s91, 0
      %s94 = sadd.s32 %s93, 1
      %s95 = scalar_select %p92, %s93, %s94
      %p98 = pneg %p92
      %p99 = scmp.eq.s32.totalorder %s13, 1
      %p100 = por %p98, %p99
      %p101 = scmp.ne.s32.totalorder %s93, %s96
      %p102 = scmp.eq.s32.totalorder %s13, 0
      %p103 = por %p101, %p102
      %p104 = scmp.ne.s32.totalorder %s93, %s96
      %p105 = scmp.eq.s32.totalorder %s18, 1
      %p106 = por %p104, %p105
      %p107 = scmp.ne.s32.totalorder %s96, %s97
      %p108 = scmp.eq.s32.totalorder %s18, 0
      %p109 = por %p107, %p108
      %p110 = scmp.ne.s32.totalorder %s96, %s97
      %p111 = scmp.eq.s32.totalorder %s19, 1
      %p112 = por %p110, %p111
      %p114 = scmp.ne.s32.totalorder %s97, %s113
      %p115 = scmp.eq.s32.totalorder %s19, 0
      %p116 = por %p114, %p115
      %s117 = sadd.s32 %s20, %s21
      %s118 = sadd.s32 %s32, %s28
      %s119 = ssub.s32 %s117, %s118
      %p120 = scmp.eq.s32.totalorder %s119, 0
      %s122 = sadd.s32 %s121, 1
      %s123 = scalar_select %p120, %s121, %s122
      %p126 = pneg %p120
      %p127 = scmp.eq.s32.totalorder %s13, 1
      %p128 = por %p126, %p127
      %p129 = scmp.ne.s32.totalorder %s121, %s124
      %p130 = scmp.eq.s32.totalorder %s13, 0
      %p131 = por %p129, %p130
      %p132 = scmp.ne.s32.totalorder %s121, %s124
      %p133 = scmp.eq.s32.totalorder %s18, 1
      %p134 = por %p132, %p133
      %p135 = scmp.ne.s32.totalorder %s124, %s125
      %p136 = scmp.eq.s32.totalorder %s18, 0
      %p137 = por %p135, %p136
      %p138 = scmp.ne.s32.totalorder %s124, %s125
      %p139 = scmp.eq.s32.totalorder %s19, 1
      %p140 = por %p138, %p139
      %p142 = scmp.ne.s32.totalorder %s125, %s141
      %p143 = scmp.eq.s32.totalorder %s19, 0
      %p144 = por %p142, %p143
      %s145 = ssub.s32 %s20, %s32
      %p146 = scmp.eq.s32.totalorder %s145, 0
      %s148 = sadd.s32 %s147, 1
      %s149 = scalar_select %p146, %s147, %s148
      %p152 = pneg %p146
      %p153 = scmp.eq.s32.totalorder %s13, 1
      %p154 = por %p152, %p153
      %p155 = scmp.ne.s32.totalorder %s147, %s150
      %p156 = scmp.eq.s32.totalorder %s13, 0
      %p157 = por %p155, %p156
      %p158 = scmp.ne.s32.totalorder %s147, %s150
      %p159 = scmp.eq.s32.totalorder %s18, 1
      %p160 = por %p158, %p159
      %p161 = scmp.ne.s32.totalorder %s150, %s151
      %p162 = scmp.eq.s32.totalorder %s18, 0
      %p163 = por %p161, %p162
      %p164 = scmp.ne.s32.totalorder %s150, %s151
      %p165 = scmp.eq.s32.totalorder %s19, 1
      %p166 = por %p164, %p165
      %p168 = scmp.ne.s32.totalorder %s151, %s167
      %p169 = scmp.eq.s32.totalorder %s19, 0
      %p170 = por %p168, %p169
      %p171 = scmp.le.s32.totalorder 1, %s13
      %p172 = scmp.lt.s32.totalorder %s13, 3
      %p173 = pnand %p171, %p172
      %p174 = pneg %p173
      // Predicated region
      $region9: #{tpu_custom_call.1} parent=5 // pred_check
        _
      $region10: #{tpu_custom_call.1} parent=5 // pred_check_branch
        %176 = sbr.rel (%p173) target = $region12
      $region11: #{tpu_custom_call.1} parent=5 // pred_region
        %s177 = ssub.s32 %s13, 1
      $region12: #{tpu_custom_call.1} parent=5 // pred_fallthru
        _
      %p178 = scmp.lt.s32.totalorder %s13, 2
      // Predicated region
      $region13: #{tpu_custom_call.1} parent=5 // pred_check
        %p179 = pneg %p178
      $region14: #{tpu_custom_call.1} parent=5 // pred_check_branch
        %181 = sbr.rel (%p179) target = $region16
      $region15: #{tpu_custom_call.1} parent=5 // pred_region
        // Predicated region
        $region17: #{tpu_custom_call.1} parent=15 // pred_check
          %p182 = pneg %p47
        $region18: #{tpu_custom_call.1} parent=15 // pred_check_branch
          %184 = sbr.rel (%p182) target = $region20
        $region19: #{tpu_custom_call.1} parent=15 // pred_region
          %s185 = sadd.s32 %s20, %s21
          %s186 = smul.u32 2, %s185
          %p187 = scmp.lt.s32.totalorder %s186, 3
          %s188 = scalar_select %p187, %s186, 3
          %s189 = smul.addr %s188, 8
          %s190 = scalar_lea.vmem %s0, %s189
          %s191 = sadd.s32 %s20, %s21
          %s192 = smul.u32 2, %s191
        $region20: #{tpu_custom_call.1} parent=15 // pred_fallthru
          _
        // Predicated region
        $region21: #{tpu_custom_call.1} parent=15 // pred_check
          %p193 = pneg %p75
        $region22: #{tpu_custom_call.1} parent=15 // pred_check_branch
          %195 = sbr.rel (%p193) target = $region24
        $region23: #{tpu_custom_call.1} parent=15 // pred_region
          %s196 = sadd.s32 %s20, %s21
          %s197 = smul.u32 2, %s196
          %p198 = scmp.lt.s32.totalorder %s197, 3
          %s199 = scalar_select %p198, %s197, 3
          %s200 = smul.addr %s199, 8
          %s201 = scalar_lea.vmem %s1, %s200
          %s202 = sadd.s32 %s20, %s21
          %s203 = smul.u32 2, %s202
        $region24: #{tpu_custom_call.1} parent=15 // pred_fallthru
          _
        // Predicated region
        $region25: #{tpu_custom_call.1} parent=15 // pred_check
          %p204 = pneg %p103
        $region26: #{tpu_custom_call.1} parent=15 // pred_check_branch
          %206 = sbr.rel (%p204) target = $region28
        $region27: #{tpu_custom_call.1} parent=15 // pred_region
          %s207 = sadd.s32 %s20, %s21
          %s208 = smul.u32 2, %s207
          %p209 = scmp.lt.s32.totalorder %s208, 3
          %s210 = scalar_select %p209, %s208, 3
          %s211 = smul.addr %s210, 8
          %s212 = scalar_lea.vmem %s2, %s211
          %s213 = sadd.s32 %s20, %s21
          %s214 = smul.u32 2, %s213
        $region28: #{tpu_custom_call.1} parent=15 // pred_fallthru
          _
        // Predicated region
        $region29: #{tpu_custom_call.1} parent=15 // pred_check
          %p215 = pneg %p131
        $region30: #{tpu_custom_call.1} parent=15 // pred_check_branch
          %217 = sbr.rel (%p215) target = $region32
        $region31: #{tpu_custom_call.1} parent=15 // pred_region
          %s218 = sadd.s32 %s20, %s21
          %s219 = smul.u32 2, %s218
          %p220 = scmp.lt.s32.totalorder %s219, 3
          %s221 = scalar_select %p220, %s219, 3
          %s222 = smul.addr %s221, 8
          %s223 = scalar_lea.vmem %s3, %s222
          %s224 = sadd.s32 %s20, %s21
          %s225 = smul.u32 2, %s224
        $region32: #{tpu_custom_call.1} parent=15 // pred_fallthru
          _
      $region16: #{tpu_custom_call.1} parent=5 // pred_fallthru
        _
      %p226 = scmp.le.s32.totalorder 1, %s13
      %p227 = scmp.lt.s32.totalorder %s13, 3
      %p228 = pnand %p226, %p227
      %p229 = pneg %p228
      // Predicated region
      $region33: #{tpu_custom_call.1} parent=5 // pred_check
        _
      $region34: #{tpu_custom_call.1} parent=5 // pred_check_branch
        %231 = sbr.rel (%p228) target = $region36
      $region35: #{tpu_custom_call.1} parent=5 // pred_region
        %s232 = ssub.s32 %s13, 1
        %s233 = sadd.s32 %s22, %s23
        %s234 = smul.u32 2, %s233
        %p235 = scmp.lt.s32.totalorder %s234, 3
        %s236 = scalar_select %p235, %s234, 3
        %s237 = smul.addr %s236, 8
        %s238 = scalar_lea.vmem %s0, %s237
        %p239 = pneg %p53
        %p240 = pneg %p50
        %s241 = sadd.s32 %s22, %s23
        %s242 = smul.u32 2, %s241
        %p243 = scmp.lt.s32.totalorder %s242, 3
        %s244 = scalar_select %p243, %s242, 3
        %s245 = smul.addr %s244, 8
        %s246 = scalar_lea.vmem %s1, %s245
        %p247 = pneg %p81
        %p248 = pneg %p78
        %s249 = sadd.s32 %s22, %s23
        %s250 = smul.u32 2, %s249
        %p251 = scmp.lt.s32.totalorder %s250, 3
        %s252 = scalar_select %p251, %s250, 3
        %s253 = smul.addr %s252, 8
        %s254 = scalar_lea.vmem %s2, %s253
        %p255 = pneg %p109
        %p256 = pneg %p106
        %s257 = sadd.s32 %s22, %s23
        %s258 = smul.u32 2, %s257
        %p259 = scmp.lt.s32.totalorder %s258, 3
        %s260 = scalar_select %p259, %s258, 3
        %s261 = smul.addr %s260, 8
        %s262 = scalar_lea.vmem %s3, %s261
        %p263 = pneg %p137
        %p264 = pneg %p134
        %p265 = pneg %p163
        %p266 = pneg %p160
        %s267 = sand.u32 %s150, 1
        %s268 = scalar_lea.sflag [#allocation3], %s267
        %s269 = sand.u32 %s150, 1
        %s270 = smul.addr %s269, 8
        %s271 = scalar_lea.vmem [#allocation2], %s270
        %s272 = sadd.s32 %s22, %s23
        %s273 = smul.u32 2, %s272
        %p274 = scmp.lt.s32.totalorder %s273, 3
        %s275 = scalar_select %p274, %s273, 3
        %s276 = smul.addr %s275, 8
        %s277 = scalar_lea.vmem %s0, %s276
        %s278 = sadd.s32 %s22, %s23
        %s279 = smul.u32 2, %s278
        %s280 = sadd.s32 %s22, %s23
        %s281 = smul.u32 2, %s280
        %p282 = scmp.lt.s32.totalorder %s281, 3
        %s283 = scalar_select %p282, %s281, 3
        %s284 = smul.addr %s283, 8
        %s285 = scalar_lea.vmem %s1, %s284
        %s286 = sadd.s32 %s22, %s23
        %s287 = smul.u32 2, %s286
        %s288 = sadd.s32 %s22, %s23
        %s289 = smul.u32 2, %s288
        %p290 = scmp.lt.s32.totalorder %s289, 3
        %s291 = scalar_select %p290, %s289, 3
        %s292 = smul.addr %s291, 8
        %s293 = scalar_lea.vmem %s2, %s292
        %s294 = sadd.s32 %s22, %s23
        %s295 = smul.u32 2, %s294
        %s296 = sadd.s32 %s22, %s23
        %s297 = smul.u32 2, %s296
        %p298 = scmp.lt.s32.totalorder %s297, 3
        %s299 = scalar_select %p298, %s297, 3
        %s300 = smul.addr %s299, 8
        %s301 = scalar_lea.vmem %s3, %s300
        %s302 = sadd.s32 %s22, %s23
        %s303 = smul.u32 2, %s302
        %p304 = scmp.eq.s32.totalorder %s23, 0
        // Predicated region
        $region37: #{tpu_custom_call.1} parent=35 // pred_check
          %p305 = pneg %p304
        $region38: #{tpu_custom_call.1} parent=35 // pred_check_branch
          %307 = sbr.rel (%p305) target = $region40
        $region39: #{tpu_custom_call.1} parent=35 // pred_region
          %308 = vst [vmem:[%s271] sm:$0xff] 0.0
        $region40: #{tpu_custom_call.1} parent=35 // pred_fallthru
          _
        %v309 = vld [vmem:[%s277] sm:$0xff]
        %v310 = vld [vmem:[%s277 + $0x8] sm:$0xff]
        %v311 = vld [vmem:[%s285] sm:$0xff]
        %v312 = vld [vmem:[%s285 + $0x8] sm:$0xff]
        %v313 = vld [vmem:[%s293] sm:$0xff]
        %v314 = vld [vmem:[%s293 + $0x8] sm:$0xff]
        %v315 = vsub.f32 1.0, %v313
        %v316 = vsub.f32 1.0, %v314
        %v317 = vld [vmem:[%s301] sm:$0xff]
        %v318 = vld [vmem:[%s301 + $0x8] sm:$0xff]
        %v319 = vsub.f32 1.0, %v317
        %v320 = vsub.f32 1.0, %v318
        %322 = vset.pattern.permute.xlu0 0
        %323 = vperm.xlu0 %322, %v315
        %v324 = vpop.permute.xlu0 %323
        %327 = vset.pattern.permute.xlu0 0
        %328 = vperm.xlu0 %327, %v316
        %v329 = vpop.permute.xlu0 %328
        %v331 = vmul.f32 %v309, %v324
        %v332 = vmul.f32 %v310, %v329
        %334 = vset.pattern.permute.xlu0 0
        %335 = vperm.xlu0 %334, %v319
        %v336 = vpop.permute.xlu0 %335
        %339 = vset.pattern.permute.xlu0 0
        %340 = vperm.xlu0 %339, %v320
        %v341 = vpop.permute.xlu0 %340
        %v343 = vmul.f32 %v311, %v336
        %v344 = vmul.f32 %v312, %v341
        %v345 = vsub.f32 %v331, %v343
        %v346 = vsub.f32 %v332, %v344
        %v347 = vld [vmem:[%s271] sm:$0xff]
        %v348 = vmul.f32 %v345, %v345
        %v349 = vmul.f32 %v346, %v346
        %v350 = vadd.f32 %v348, %v349
        %v351 = vadd.f32 %v347, %v350
        %352 = vst [vmem:[%s271] sm:$0xff] %v351
        %s353 = sand.u32 %s150, 1
        %s354 = scalar_lea.sflag [#allocation3], %s353
        %s355 = sand.u32 %s150, 1
        %s356 = smul.addr %s355, 8
        %s357 = scalar_lea.vmem [#allocation2], %s356
        // Predicated region
        $region41: #{tpu_custom_call.1} parent=35 // pred_check
          %p358 = pneg %p160
        $region42: #{tpu_custom_call.1} parent=35 // pred_check_branch
          %360 = sbr.rel (%p358) target = $region44
        $region43: #{tpu_custom_call.1} parent=35 // pred_region
          %s362 = ssub.s32 128, 128
          %363 = vsyncadd %s354, %s362
          %s364 = smul.addr %s22, 128
          %s365 = scalar_lea.hbm %s4, %s364
          %s367 = sshll.u32 %s357, 4
          %s368 = int_to_ptr.vmem [resolvable:$true] %s367
          %370 = dma.vmem_to_hbm [thread:$0]  %s368, 128, %s365, %s354
        $region44: #{tpu_custom_call.1} parent=35 // pred_fallthru
          _
      $region36: #{tpu_custom_call.1} parent=5 // pred_fallthru
        _
      %p371 = scmp.le.s32.totalorder 2, %s13
      // Predicated region
      $region45: #{tpu_custom_call.1} parent=5 // pred_check
        %p372 = pneg %p371
      $region46: #{tpu_custom_call.1} parent=5 // pred_check_branch
        %374 = sbr.rel (%p372) target = $region48
      $region47: #{tpu_custom_call.1} parent=5 // pred_region
        %s375 = ssub.s32 %s13, 2
        // Predicated region
        $region49: #{tpu_custom_call.1} parent=47 // pred_check
          %p376 = pneg %p166
        $region50: #{tpu_custom_call.1} parent=47 // pred_check_branch
          %378 = sbr.rel (%p376) target = $region52
        $region51: #{tpu_custom_call.1} parent=47 // pred_region
          %s379 = sand.u32 %s151, 1
          %s380 = scalar_lea.sflag [#allocation3], %s379
          %s381 = sand.u32 %s151, 1
          %s382 = smul.addr %s381, 8
          %s383 = scalar_lea.vmem [#allocation2], %s382
          %384 = dma.done %s380, 128
        $region52: #{tpu_custom_call.1} parent=47 // pred_fallthru
          _
      $region48: #{tpu_custom_call.1} parent=5 // pred_fallthru
        _
    $region6: #{tpu_custom_call.1} parent=1 // loop_footer
      %s17 = sadd.s32 1, %s13
    $region7: #{tpu_custom_call.1} parent=1 // loop_footer_branch
      %12 = sbr.rel target = $region3
    $region8: #{tpu_custom_call.1} parent=1 // loop_exit
      _
    %385 = vsyncpa [#allocation3], 1
    %s386 = scalar_lea.sflag [#allocation3], 1
    %387 = vsyncpa %s386, 1

</llo_original>
